<compile_context>
chip_gen: v7x
topology: tpu7x:2x2x1
jax: 0.10.0
libtpu: 0.0.40
codegen_flags: <defaults>
</compile_context>

<pallas_src>
import math

import jax
import jax.numpy as jnp
from jax.experimental import pallas as pl
from jax.experimental.pallas import tpu as pltpu


def _kv_attention_kernel(enc_ref, len_ref, dec_ref,
                         wk_ref, bk_ref, wq_ref, bq_ref, wv_ref, bv_ref,
                         out_ref, attn_ref):
    bt, L, E = enc_ref.shape
    A = wk_ref.shape[1]
    O = wv_ref.shape[1]

    # One big (bt*L, E) slab feeds the MXU for both projections.
    enc2 = enc_ref[...].reshape(bt * L, E)

    keys = (jnp.dot(enc2, wk_ref[...], preferred_element_type=jnp.float32)
            + bk_ref[...]).reshape(bt, L, A)
    vals = (jnp.dot(enc2, wv_ref[...], preferred_element_type=jnp.float32)
            + bv_ref[...]).reshape(bt, L, O)
    query = (jnp.dot(dec_ref[...], wq_ref[...], preferred_element_type=jnp.float32)
             + bq_ref[...])                                        # (bt, A) f32

    # Fold the 1/sqrt(A) scaling into the (small) query instead of the scores.
    query = query * jnp.float32(1.0 / math.sqrt(A))

    # scores[b, l] = <keys[b, l, :], query[b, :]>.
    # Per-batch matvec: VPU multiply + lane reduce (MXU would be mostly idle).
    scores = jnp.sum(keys * query[:, None, :], axis=-1)            # (bt, L)

    # Mask padded encoder frames (l >= enc_len[b]) with -inf.
    pos = jax.lax.broadcasted_iota(jnp.int32, (bt, L), 1)
    valid = pos < len_ref[...]                                     # (bt, L)
    scores = jnp.where(valid, scores, -jnp.inf)

    # Softmax over the encoder-length axis (f32 epilogue on all chips).
    m = jnp.max(scores, axis=-1, keepdims=True)
    e = jnp.exp(scores - m)                                        # EUP
    s = jnp.sum(e, axis=-1, keepdims=True)
    attn = e / s                                                   # (bt, L)

    # Context vector: out[b, :] = sum_l attn[b, l] * values[b, l, :]
    out = jnp.sum(attn[:, :, None] * vals, axis=1)                 # (bt, O)

    out_ref[...] = out.astype(out_ref.dtype)
    attn_ref[...] = attn.astype(attn_ref.dtype)


def _choose_block_b(B, L):
    """Batch tile: large enough that block_b*L rows keep the MXU busy, and
    either the full batch or a multiple of 8 (sublane alignment of 2-D blocks)."""
    target = max(1, 1024 // max(L, 1))
    if B <= target:
        return B
    cand = min(B, (target // 8) * 8)
    while cand >= 8:
        if B % cand == 0:
            return cand
        cand -= 8
    return B


def key_value_attention(enc_states, enc_len, dec_states,
                        wk, bk, wq, bq, wv, bv,
                        *, block_b=None, use_bf16_matmul=False):
    """enc_states: [B, L, E], enc_len: [B], dec_states: [B, Dd].
    Weights use math layout (in, out): keys = enc @ wk + bk, etc.
    Returns (context [B, O], attention weights [B, 1, L])."""
    B, L, E = enc_states.shape
    Dd = dec_states.shape[-1]
    A = wk.shape[1]
    O = wv.shape[1]
    out_dtype = enc_states.dtype

    if block_b is None:
        block_b = _choose_block_b(B, L)
    assert B % block_b == 0, "B must be divisible by block_b"

    if use_bf16_matmul:
        # bf16 MXU operands; accumulation stays f32 (preferred_element_type),
        # biases and the softmax/epilogue stay f32 (friendly to v5e's VPU too).
        enc_states = enc_states.astype(jnp.bfloat16)
        dec_states = dec_states.astype(jnp.bfloat16)
        wk = wk.astype(jnp.bfloat16)
        wq = wq.astype(jnp.bfloat16)
        wv = wv.astype(jnp.bfloat16)

    lens = enc_len.astype(jnp.int32).reshape(B, 1)
    bk2 = bk.reshape(1, A).astype(jnp.float32)
    bq2 = bq.reshape(1, A).astype(jnp.float32)
    bv2 = bv.reshape(1, O).astype(jnp.float32)

    in_bytes = (enc_states.size * enc_states.dtype.itemsize
                + dec_states.size * dec_states.dtype.itemsize
                + lens.size * 4
                + wk.size * wk.dtype.itemsize + wq.size * wq.dtype.itemsize
                + wv.size * wv.dtype.itemsize + (A + A + O) * 4)
    out_bytes = (B * O + B * L) * jnp.dtype(out_dtype).itemsize
    cost = pl.CostEstimate(
        flops=2 * B * L * E * (A + O) + 2 * B * Dd * A
              + 2 * B * L * A + 2 * B * L * O,
        transcendentals=B * L,
        bytes_accessed=in_bytes + out_bytes,
    )

    out, attn = pl.pallas_call(
        _kv_attention_kernel,
        out_shape=(jax.ShapeDtypeStruct((B, O), out_dtype),
                   jax.ShapeDtypeStruct((B, L), out_dtype)),
        grid_spec=pltpu.PrefetchScalarGridSpec(
            num_scalar_prefetch=0,
            grid=(B // block_b,),
            in_specs=[
                pl.BlockSpec((block_b, L, E), lambda i: (i, 0, 0)),   # enc_states
                pl.BlockSpec((block_b, 1), lambda i: (i, 0)),         # enc_len
                pl.BlockSpec((block_b, Dd), lambda i: (i, 0)),        # dec_states
                # Weights/biases: constant index_map -> VMEM-resident across grid.
                # TODO(synk): for large E/A/O, single-buffer them (pl.Buffered(1))
                # or add a K-reduction grid axis instead of whole-weight blocks.
                pl.BlockSpec((E, A), lambda i: (0, 0)),               # Wk
                pl.BlockSpec((1, A), lambda i: (0, 0)),               # bk
                pl.BlockSpec((Dd, A), lambda i: (0, 0)),              # Wq
                pl.BlockSpec((1, A), lambda i: (0, 0)),               # bq
                pl.BlockSpec((E, O), lambda i: (0, 0)),               # Wv
                pl.BlockSpec((1, O), lambda i: (0, 0)),               # bv
            ],
            out_specs=(
                pl.BlockSpec((block_b, O), lambda i: (i, 0)),         # context
                pl.BlockSpec((block_b, L), lambda i: (i, 0)),         # attn weights
            ),
        ),
        compiler_params=pltpu.CompilerParams(
            dimension_semantics=("parallel",),
            # Explicit budget: plenty on v5e/v6e (128 MiB physical) and still
            # leaves headroom within v7x's 64 MiB VMEM.
            vmem_limit_bytes=48 * 1024 * 1024,
        ),
        cost_estimate=cost,
    )(enc_states, lens, dec_states, wk, bk2, wq, bq2, wv, bv2)

    # Module returns normalized_scores with shape [B, 1, L].
    return out, attn.reshape(B, 1, L)


def _xavier_uniform(key, fan_in, fan_out, dtype=jnp.float32):
    limit = (6.0 / (fan_in + fan_out)) ** 0.5
    return jax.random.uniform(key, (fan_in, fan_out), dtype=dtype,
                              minval=-limit, maxval=limit)


if __name__ == "__main__":
    # Small shapes consistent with the module:
    # batch=2, enc seq len=8, enc_dim=32, dec_dim=32, attn_dim=32, output_dim=32.
    B, L, E, Dd, A, O = 2, 8, 32, 32, 32, 32

    key = jax.random.PRNGKey(0)
    (k_enc, k_dec, k_wk, k_bk, k_wq, k_bq, k_wv, k_bv) = jax.random.split(key, 8)

    enc = jax.random.normal(k_enc, (B, L, E), dtype=jnp.float32)
    dec = jax.random.normal(k_dec, (B, Dd), dtype=jnp.float32)
    enc_len = jnp.array([L, L - 3], dtype=jnp.int32)   # second sequence is padded

    wk = _xavier_uniform(k_wk, E, A)
    bk = jax.random.uniform(k_bk, (A,), minval=-0.05, maxval=0.05)
    wq = _xavier_uniform(k_wq, Dd, A)
    bq = jax.random.uniform(k_bq, (A,), minval=-0.05, maxval=0.05)
    wv = _xavier_uniform(k_wv, E, O)
    bv = jax.random.uniform(k_bv, (O,), minval=-0.05, maxval=0.05)

    out, attn = key_value_attention(enc, enc_len, dec, wk, bk, wq, bq, wv, bv)
    out = jax.block_until_ready(out)
    attn = jax.block_until_ready(attn)

    # Plain-JAX reference (mirrors the PyTorch forward).
    k_ref = enc @ wk + bk                                   # [B, L, A]
    v_ref = enc @ wv + bv                                   # [B, L, O]
    q_ref = dec @ wq + bq                                   # [B, A]
    sc = jnp.einsum("bla,ba->bl", k_ref, q_ref) / jnp.sqrt(jnp.float32(A))
    mask = jnp.arange(L)[None, :] < enc_len[:, None]
    sc = jnp.where(mask, sc, -jnp.inf)
    w_ref = jax.nn.softmax(sc, axis=-1)
    o_ref = jnp.einsum("bl,blo->bo", w_ref, v_ref)

    assert out.shape == (B, O)
    assert attn.shape == (B, 1, L)
    assert jnp.allclose(out, o_ref, atol=1e-4, rtol=1e-4)
    assert jnp.allclose(attn[:, 0, :], w_ref, atol=1e-4, rtol=1e-4)
    # Padded encoder positions must get (numerically) zero attention weight.
    assert jnp.all(attn[1, 0, L - 3:] < 1e-6)

    # bf16 MXU path (f32 accumulation): loose tolerance vs the f32 reference.
    out_bf, attn_bf = key_value_attention(enc, enc_len, dec, wk, bk, wq, bq, wv, bv,
                                          use_bf16_matmul=True)
    out_bf = jax.block_until_ready(out_bf)
    attn_bf = jax.block_until_ready(attn_bf)
    assert jnp.allclose(out_bf, o_ref, atol=1e-1, rtol=1e-1)
    assert jnp.allclose(attn_bf[:, 0, :], w_ref, atol=1e-1, rtol=1e-1)

    print("KERNEL_OK")
</pallas_src>

<mosaic_0001>
module attributes {stable_mosaic.version = 11 : i64} {
  func.func @_kv_attention_kernel(%arg0: i32, %arg1: memref<2x8x32xf32, #tpu.memory_space<vmem>>, %arg2: memref<2x1xi32, #tpu.memory_space<vmem>>, %arg3: memref<2x32xf32, #tpu.memory_space<vmem>>, %arg4: memref<32x32xf32, #tpu.memory_space<vmem>>, %arg5: memref<1x32xf32, #tpu.memory_space<vmem>>, %arg6: memref<32x32xf32, #tpu.memory_space<vmem>>, %arg7: memref<1x32xf32, #tpu.memory_space<vmem>>, %arg8: memref<32x32xf32, #tpu.memory_space<vmem>>, %arg9: memref<1x32xf32, #tpu.memory_space<vmem>>, %arg10: memref<2x32xf32, #tpu.memory_space<vmem>>, %arg11: memref<2x8xf32, #tpu.memory_space<vmem>>) attributes {dimension_semantics = [#tpu.dimension_semantics<parallel>], iteration_bounds = array<i64: 1>, scalar_prefetch = 0 : i64, scratch_operands = 0 : i64, tpu.core_type = #tpu.core_type<tc>, window_params = [{transform_indices = @transform_0, window_bounds = array<i64: 2, 8, 32>}, {transform_indices = @transform_1, window_bounds = array<i64: 2, 1>}, {transform_indices = @transform_2, window_bounds = array<i64: 2, 32>}, {pipeline_mode = #tpu.pipeline_mode<synchronous>, transform_indices = @transform_3, window_bounds = array<i64: 32, 32>}, {pipeline_mode = #tpu.pipeline_mode<synchronous>, transform_indices = @transform_4, window_bounds = array<i64: 1, 32>}, {pipeline_mode = #tpu.pipeline_mode<synchronous>, transform_indices = @transform_5, window_bounds = array<i64: 32, 32>}, {pipeline_mode = #tpu.pipeline_mode<synchronous>, transform_indices = @transform_6, window_bounds = array<i64: 1, 32>}, {pipeline_mode = #tpu.pipeline_mode<synchronous>, transform_indices = @transform_7, window_bounds = array<i64: 32, 32>}, {pipeline_mode = #tpu.pipeline_mode<synchronous>, transform_indices = @transform_8, window_bounds = array<i64: 1, 32>}, {transform_indices = @transform_9, window_bounds = array<i64: 2, 32>}, {transform_indices = @transform_10, window_bounds = array<i64: 2, 8>}]} {
    %c0 = arith.constant 0 : index
    %c0_0 = arith.constant 0 : index
    %c0_1 = arith.constant 0 : index
    %0 = vector.load %arg1[%c0, %c0_0, %c0_1] : memref<2x8x32xf32, #tpu.memory_space<vmem>>, vector<2x8x32xf32>
    %1 = vector.shape_cast %0 : vector<2x8x32xf32> to vector<16x32xf32>
    %c0_2 = arith.constant 0 : index
    %c0_3 = arith.constant 0 : index
    %2 = vector.load %arg4[%c0_2, %c0_3] : memref<32x32xf32, #tpu.memory_space<vmem>>, vector<32x32xf32>
    %cst = arith.constant dense<0.000000e+00> : vector<16x32xf32>
    %3 = tpu.matmul %1, %2, %cst {dimension_numbers = #tpu.dot_dimension_numbers<[1], [0], [0], [1], [0, 0, 1, 1], [], []>} : vector<16x32xf32>, vector<32x32xf32>, vector<16x32xf32> -> vector<16x32xf32>
    %c0_4 = arith.constant 0 : index
    %c0_5 = arith.constant 0 : index
    %4 = vector.load %arg5[%c0_4, %c0_5] : memref<1x32xf32, #tpu.memory_space<vmem>>, vector<1x32xf32>
    %5 = vector.broadcast %4 : vector<1x32xf32> to vector<16x32xf32>
    %6 = arith.addf %3, %5 : vector<16x32xf32>
    %7 = vector.shape_cast %6 : vector<16x32xf32> to vector<2x8x32xf32>
    %c0_6 = arith.constant 0 : index
    %c0_7 = arith.constant 0 : index
    %8 = vector.load %arg8[%c0_6, %c0_7] : memref<32x32xf32, #tpu.memory_space<vmem>>, vector<32x32xf32>
    %cst_8 = arith.constant dense<0.000000e+00> : vector<16x32xf32>
    %9 = tpu.matmul %1, %8, %cst_8 {dimension_numbers = #tpu.dot_dimension_numbers<[1], [0], [0], [1], [0, 0, 1, 1], [], []>} : vector<16x32xf32>, vector<32x32xf32>, vector<16x32xf32> -> vector<16x32xf32>
    %c0_9 = arith.constant 0 : index
    %c0_10 = arith.constant 0 : index
    %10 = vector.load %arg9[%c0_9, %c0_10] : memref<1x32xf32, #tpu.memory_space<vmem>>, vector<1x32xf32>
    %11 = vector.broadcast %10 : vector<1x32xf32> to vector<16x32xf32>
    %12 = arith.addf %9, %11 : vector<16x32xf32>
    %13 = vector.shape_cast %12 : vector<16x32xf32> to vector<2x8x32xf32>
    %c0_11 = arith.constant 0 : index
    %c0_12 = arith.constant 0 : index
    %14 = vector.load %arg3[%c0_11, %c0_12] : memref<2x32xf32, #tpu.memory_space<vmem>>, vector<2x32xf32>
    %c0_13 = arith.constant 0 : index
    %c0_14 = arith.constant 0 : index
    %15 = vector.load %arg6[%c0_13, %c0_14] : memref<32x32xf32, #tpu.memory_space<vmem>>, vector<32x32xf32>
    %cst_15 = arith.constant dense<0.000000e+00> : vector<2x32xf32>
    %16 = tpu.matmul %14, %15, %cst_15 {dimension_numbers = #tpu.dot_dimension_numbers<[1], [0], [0], [1], [0, 0, 1, 1], [], []>} : vector<2x32xf32>, vector<32x32xf32>, vector<2x32xf32> -> vector<2x32xf32>
    %c0_16 = arith.constant 0 : index
    %c0_17 = arith.constant 0 : index
    %17 = vector.load %arg7[%c0_16, %c0_17] : memref<1x32xf32, #tpu.memory_space<vmem>>, vector<1x32xf32>
    %18 = vector.broadcast %17 : vector<1x32xf32> to vector<2x32xf32>
    %19 = arith.addf %16, %18 : vector<2x32xf32>
    %cst_18 = arith.constant 0.176776692 : f32
    %20 = vector.broadcast %cst_18 : f32 to vector<2x32xf32>
    %21 = arith.mulf %19, %20 : vector<2x32xf32>
    %22 = vector.shape_cast %21 : vector<2x32xf32> to vector<2x1x32xf32>
    %23 = vector.broadcast %22 : vector<2x1x32xf32> to vector<2x8x32xf32>
    %24 = arith.mulf %7, %23 : vector<2x8x32xf32>
    %cst_19 = arith.constant dense<0.000000e+00> : vector<2x8xf32>
    %25 = vector.multi_reduction <add>, %24, %cst_19 [2] : vector<2x8x32xf32> to vector<2x8xf32>
    %26 = tpu.iota {dimensions = array<i32: 1>} : vector<2x8xi32>
    %c0_20 = arith.constant 0 : index
    %c0_21 = arith.constant 0 : index
    %27 = vector.load %arg2[%c0_20, %c0_21] : memref<2x1xi32, #tpu.memory_space<vmem>>, vector<2x1xi32>
    %28 = vector.broadcast %27 : vector<2x1xi32> to vector<2x8xi32>
    %29 = arith.cmpi slt, %26, %28 : vector<2x8xi32>
    %cst_22 = arith.constant 0xFF800000 : f32
    %30 = vector.broadcast %cst_22 : f32 to vector<2x8xf32>
    %31 = arith.select %29, %25, %30 : vector<2x8xi1>, vector<2x8xf32>
    %cst_23 = arith.constant dense<0xFF800000> : vector<2xf32>
    %32 = vector.multi_reduction <maximumf>, %31, %cst_23 [1] : vector<2x8xf32> to vector<2xf32>
    %33 = vector.shape_cast %32 : vector<2xf32> to vector<2x1xf32>
    %34 = vector.broadcast %33 : vector<2x1xf32> to vector<2x8xf32>
    %35 = arith.subf %31, %34 : vector<2x8xf32>
    %36 = math.exp %35 : vector<2x8xf32>
    %cst_24 = arith.constant dense<0.000000e+00> : vector<2xf32>
    %37 = vector.multi_reduction <add>, %36, %cst_24 [1] : vector<2x8xf32> to vector<2xf32>
    %38 = vector.shape_cast %37 : vector<2xf32> to vector<2x1xf32>
    %39 = vector.broadcast %38 : vector<2x1xf32> to vector<2x8xf32>
    %40 = arith.divf %36, %39 : vector<2x8xf32>
    %41 = vector.shape_cast %40 : vector<2x8xf32> to vector<2x8x1xf32>
    %42 = vector.broadcast %41 : vector<2x8x1xf32> to vector<2x8x32xf32>
    %43 = arith.mulf %42, %13 : vector<2x8x32xf32>
    %cst_25 = arith.constant dense<0.000000e+00> : vector<2x32xf32>
    %44 = vector.multi_reduction <add>, %43, %cst_25 [1] : vector<2x8x32xf32> to vector<2x32xf32>
    %c0_26 = arith.constant 0 : index
    %c0_27 = arith.constant 0 : index
    %45 = vector.load %arg10[%c0_26, %c0_27] : memref<2x32xf32, #tpu.memory_space<vmem>>, vector<2x32xf32>
    tpu.vector_store %arg10[%c0_26, %c0_27], %44 {strides = array<i32>} : memref<2x32xf32, #tpu.memory_space<vmem>>, vector<2x32xf32>,
    %c0_28 = arith.constant 0 : index
    %c0_29 = arith.constant 0 : index
    %46 = vector.load %arg11[%c0_28, %c0_29] : memref<2x8xf32, #tpu.memory_space<vmem>>, vector<2x8xf32>
    tpu.vector_store %arg11[%c0_28, %c0_29], %40 {strides = array<i32>} : memref<2x8xf32, #tpu.memory_space<vmem>>, vector<2x8xf32>,
    return
  }
  func.func @transform_0(%arg0: i32) -> (i32, i32, i32) {
    %c0_i32 = arith.constant 0 : i32
    %c0_i32_0 = arith.constant 0 : i32
    %c0_i32_1 = arith.constant 0 : i32
    return %arg0, %c0_i32, %c0_i32_0 : i32, i32, i32
  }
  func.func @transform_1(%arg0: i32) -> (i32, i32) {
    %c0_i32 = arith.constant 0 : i32
    %c0_i32_0 = arith.constant 0 : i32
    return %arg0, %c0_i32 : i32, i32
  }
  func.func @transform_2(%arg0: i32) -> (i32, i32) {
    %c0_i32 = arith.constant 0 : i32
    %c0_i32_0 = arith.constant 0 : i32
    return %arg0, %c0_i32 : i32, i32
  }
  func.func @transform_3(%arg0: i32) -> (i32, i32) {
    %c0_i32 = arith.constant 0 : i32
    %c0_i32_0 = arith.constant 0 : i32
    %c0_i32_1 = arith.constant 0 : i32
    return %c0_i32, %c0_i32_0 : i32, i32
  }
  func.func @transform_4(%arg0: i32) -> (i32, i32) {
    %c0_i32 = arith.constant 0 : i32
    %c0_i32_0 = arith.constant 0 : i32
    %c0_i32_1 = arith.constant 0 : i32
    return %c0_i32, %c0_i32_0 : i32, i32
  }
  func.func @transform_5(%arg0: i32) -> (i32, i32) {
    %c0_i32 = arith.constant 0 : i32
    %c0_i32_0 = arith.constant 0 : i32
    %c0_i32_1 = arith.constant 0 : i32
    return %c0_i32, %c0_i32_0 : i32, i32
  }
  func.func @transform_6(%arg0: i32) -> (i32, i32) {
    %c0_i32 = arith.constant 0 : i32
    %c0_i32_0 = arith.constant 0 : i32
    %c0_i32_1 = arith.constant 0 : i32
    return %c0_i32, %c0_i32_0 : i32, i32
  }
  func.func @transform_7(%arg0: i32) -> (i32, i32) {
    %c0_i32 = arith.constant 0 : i32
    %c0_i32_0 = arith.constant 0 : i32
    %c0_i32_1 = arith.constant 0 : i32
    return %c0_i32, %c0_i32_0 : i32, i32
  }
  func.func @transform_8(%arg0: i32) -> (i32, i32) {
    %c0_i32 = arith.constant 0 : i32
    %c0_i32_0 = arith.constant 0 : i32
    %c0_i32_1 = arith.constant 0 : i32
    return %c0_i32, %c0_i32_0 : i32, i32
  }
  func.func @transform_9(%arg0: i32) -> (i32, i32) {
    %c0_i32 = arith.constant 0 : i32
    %c0_i32_0 = arith.constant 0 : i32
    return %arg0, %c0_i32 : i32, i32
  }
  func.func @transform_10(%arg0: i32) -> (i32, i32) {
    %c0_i32 = arith.constant 0 : i32
    %c0_i32_0 = arith.constant 0 : i32
    return %arg0, %c0_i32 : i32, i32
  }
}

</mosaic_0001>

<llo_original>
// kernel: tpu_custom_call.1
$region0: #{tpu_custom_call.1}
  #allocation0 [shape = 'u32[]', space=smem, size = 0x4, offset = 0x4, fixed_abs, tag = 'smem constant byte address 0x4 - core index']
  #allocation1 [shape = 'u32[144,128]{1,0:T(1,128)}', space=vmem, size = 0x12000, scoped, tag = 'internal scratch']
  %s0 = inlined_call_operand.hbm [shape: f32[2,8,32], index: 0, kind: input, shape index: {}]
  %s1 = inlined_call_operand.vmem [shape: s32[2,1], index: 1, kind: input, shape index: {}]
  %s2 = inlined_call_operand.vmem [shape: f32[2,32], index: 2, kind: input, shape index: {}]
  %s3 = inlined_call_operand.hbm [shape: f32[32,32], index: 3, kind: input, shape index: {}]
  %s4 = inlined_call_operand.vmem [shape: f32[1,32], index: 4, kind: input, shape index: {}]
  %s5 = inlined_call_operand.hbm [shape: f32[32,32], index: 5, kind: input, shape index: {}]
  %s6 = inlined_call_operand.vmem [shape: f32[1,32], index: 6, kind: input, shape index: {}]
  %s7 = inlined_call_operand.hbm [shape: f32[32,32], index: 7, kind: input, shape index: {}]
  %s8 = inlined_call_operand.vmem [shape: f32[1,32], index: 8, kind: input, shape index: {}]
  %s9 = inlined_call_operand.hbm [shape: f32[2,32], index: 9, kind: output, shape index: {0}]
  %s10 = inlined_call_operand.hbm [shape: f32[2,8], index: 10, kind: output, shape index: {1}]
  %11 = xla_tuple %s9, %s10
  %s12 = sld [smem:[#allocation0]]
  $region70: #{tpu_custom_call.1} parent=0
    _
  %s14 = ssub.s32 1, %s12
  %s15 = scalar_select 0, %s14, %s12
  $region1: #{tpu_custom_call.1} parent=0
    #allocation2 [shape = 'u8[8192]{0}', space=vmem, size = 0x2000, scoped, tag = 'input window, operand 0, single buffered']
    #allocation3 [shape = 's32[1]{0}', space=sflag, size = 0x4, scoped, tag = 'scoped memory for tpu_custom_call.1']
    #allocation4 [shape = 's32[1]{0}', space=sflag, size = 0x4, scoped, tag = 'scoped memory for tpu_custom_call.1']
    #allocation5 [shape = 'u8[16384]{0}', space=vmem, size = 0x4000, scoped, tag = 'input window, operand 3, single buffered']
    #allocation6 [shape = 's32[1]{0}', space=sflag, size = 0x4, scoped, tag = 'scoped memory for tpu_custom_call.1']
    #allocation7 [shape = 'u8[16384]{0}', space=vmem, size = 0x4000, scoped, tag = 'input window, operand 5, single buffered']
    #allocation8 [shape = 'u8[16384]{0}', space=vmem, size = 0x4000, scoped, tag = 'input window, operand 7, single buffered']
    #allocation9 [shape = 's32[1]{0}', space=sflag, size = 0x4, scoped, tag = 'scoped memory for tpu_custom_call.1']
    #allocation10 [shape = 'u8[1024]{0}', space=vmem, size = 0x400, scoped, tag = 'output window, operand 0, single buffered']
    #allocation11 [shape = 'u8[1024]{0}', space=vmem, size = 0x400, scoped, tag = 'output window, operand 1, single buffered']
    #allocation12 [shape = 's32[1]{0}', space=sflag, size = 0x4, scoped, tag = 'scoped memory for tpu_custom_call.1']
    %16 = vsyncpa [#allocation3], 0
    %17 = vsyncpa [#allocation6], 0
    %18 = vsyncpa [#allocation9], 0
    %19 = vsyncpa [#allocation4], 0
    %20 = vsyncpa [#allocation12], 0
    // Predicated region
    $region2: #{tpu_custom_call.1} parent=1 // pred_check
      _
    $region3: #{tpu_custom_call.1} parent=1 // pred_check_branch
      %22 = sbr.rel (0) target = $region5
    $region4: #{tpu_custom_call.1} parent=1 // pred_region
      %s24 = ssub.s32 256, 256
      %25 = vsyncadd [#allocation3], %s24
      %s26 = sshll.u32 [#allocation2], 4
      %s27 = int_to_ptr.vmem [resolvable:$true] %s26
      %32 = dma.hbm_to_vmem [thread:$0]  %s0, 256, %s27, [#allocation3], 128, 128, 8
    $region5: #{tpu_custom_call.1} parent=1 // pred_fallthru
      _
    // Predicated region
    $region6: #{tpu_custom_call.1} parent=1 // pred_check
      _
    $region7: #{tpu_custom_call.1} parent=1 // pred_check_branch
      %34 = sbr.rel (0) target = $region9
    $region8: #{tpu_custom_call.1} parent=1 // pred_region
      _
    $region9: #{tpu_custom_call.1} parent=1 // pred_fallthru
      _
    // Predicated region
    $region10: #{tpu_custom_call.1} parent=1 // pred_check
      _
    $region11: #{tpu_custom_call.1} parent=1 // pred_check_branch
      %36 = sbr.rel (0) target = $region13
    $region12: #{tpu_custom_call.1} parent=1 // pred_region
      _
    $region13: #{tpu_custom_call.1} parent=1 // pred_fallthru
      _
    // Predicated region
    $region14: #{tpu_custom_call.1} parent=1 // pred_check
      _
    $region15: #{tpu_custom_call.1} parent=1 // pred_check_branch
      %38 = sbr.rel (0) target = $region17
    $region16: #{tpu_custom_call.1} parent=1 // pred_region
      %s40 = ssub.s32 512, 512
      %41 = vsyncadd [#allocation6], %s40
      %s42 = sshll.u32 [#allocation5], 4
      %s43 = int_to_ptr.vmem [resolvable:$true] %s42
      %48 = dma.hbm_to_vmem [thread:$0]  %s3, 512, %s43, [#allocation6], 128, 128, 8
    $region17: #{tpu_custom_call.1} parent=1 // pred_fallthru
      _
    // Predicated region
    $region18: #{tpu_custom_call.1} parent=1 // pred_check
      _
    $region19: #{tpu_custom_call.1} parent=1 // pred_check_branch
      %50 = sbr.rel (0) target = $region21
    $region20: #{tpu_custom_call.1} parent=1 // pred_region
      _
    $region21: #{tpu_custom_call.1} parent=1 // pred_fallthru
      _
    // Predicated region
    $region22: #{tpu_custom_call.1} parent=1 // pred_check
      _
    $region23: #{tpu_custom_call.1} parent=1 // pred_check_branch
      %52 = sbr.rel (0) target = $region25
    $region24: #{tpu_custom_call.1} parent=1 // pred_region
      %s54 = ssub.s32 512, 512
      %55 = vsyncadd [#allocation6], %s54
      %s56 = sshll.u32 [#allocation7], 4
      %s57 = int_to_ptr.vmem [resolvable:$true] %s56
      %62 = dma.hbm_to_vmem [thread:$0]  %s5, 512, %s57, [#allocation6], 128, 128, 8
    $region25: #{tpu_custom_call.1} parent=1 // pred_fallthru
      _
    // Predicated region
    $region26: #{tpu_custom_call.1} parent=1 // pred_check
      _
    $region27: #{tpu_custom_call.1} parent=1 // pred_check_branch
      %64 = sbr.rel (0) target = $region29
    $region28: #{tpu_custom_call.1} parent=1 // pred_region
      _
    $region29: #{tpu_custom_call.1} parent=1 // pred_fallthru
      _
    // Predicated region
    $region30: #{tpu_custom_call.1} parent=1 // pred_check
      _
    $region31: #{tpu_custom_call.1} parent=1 // pred_check_branch
      %66 = sbr.rel (0) target = $region33
    $region32: #{tpu_custom_call.1} parent=1 // pred_region
      %s68 = ssub.s32 512, 512
      %69 = vsyncadd [#allocation9], %s68
      %s70 = sshll.u32 [#allocation8], 4
      %s71 = int_to_ptr.vmem [resolvable:$true] %s70
      %76 = dma.hbm_to_vmem [thread:$0]  %s7, 512, %s71, [#allocation9], 128, 128, 8
    $region33: #{tpu_custom_call.1} parent=1 // pred_fallthru
      _
    // Predicated region
    $region34: #{tpu_custom_call.1} parent=1 // pred_check
      _
    $region35: #{tpu_custom_call.1} parent=1 // pred_check_branch
      %78 = sbr.rel (0) target = $region37
    $region36: #{tpu_custom_call.1} parent=1 // pred_region
      _
    $region37: #{tpu_custom_call.1} parent=1 // pred_fallthru
      _
    // Predicated region
    $region38: #{tpu_custom_call.1} parent=1 // pred_check
      _
    $region39: #{tpu_custom_call.1} parent=1 // pred_check_branch
      %80 = sbr.rel (0) target = $region41
    $region40: #{tpu_custom_call.1} parent=1 // pred_region
      %81 = dma.done [#allocation3], 256
    $region41: #{tpu_custom_call.1} parent=1 // pred_fallthru
      _
    // Predicated region
    $region42: #{tpu_custom_call.1} parent=1 // pred_check
      _
    $region43: #{tpu_custom_call.1} parent=1 // pred_check_branch
      %83 = sbr.rel (0) target = $region45
    $region44: #{tpu_custom_call.1} parent=1 // pred_region
      %84 = dma.done [#allocation6], 512
    $region45: #{tpu_custom_call.1} parent=1 // pred_fallthru
      _
    // Predicated region
    $region46: #{tpu_custom_call.1} parent=1 // pred_check
      _
    $region47: #{tpu_custom_call.1} parent=1 // pred_check_branch
      %86 = sbr.rel (0) target = $region49
    $region48: #{tpu_custom_call.1} parent=1 // pred_region
      %87 = dma.done [#allocation6], 512
    $region49: #{tpu_custom_call.1} parent=1 // pred_fallthru
      _
    // Predicated region
    $region50: #{tpu_custom_call.1} parent=1 // pred_check
      _
    $region51: #{tpu_custom_call.1} parent=1 // pred_check_branch
      %89 = sbr.rel (0) target = $region53
    $region52: #{tpu_custom_call.1} parent=1 // pred_region
      %90 = dma.done [#allocation9], 512
    $region53: #{tpu_custom_call.1} parent=1 // pred_fallthru
      _
    %v91 = vld [vmem:[#allocation2] sm:$0xff]
    %v92 = vld [vmem:[#allocation2 + $0x8] sm:$0xff]
    %v93 = vld [vmem:[#allocation5] sm:$0xff]
    %v94 = vld [vmem:[#allocation5 + $0x8] sm:$0xff]
    %v95 = vld [vmem:[#allocation5 + $0x10] sm:$0xff]
    %v96 = vld [vmem:[#allocation5 + $0x18] sm:$0xff]
    %v97 = vld [vmem:[%s4] sm:$0x1]
    %v99 = vlaneseq
    %v100 = vshrl.u32 %v99, 7
    %v101 = vsub.s32 0, %v100
    %v102 = vrot.slane %v97, %v101
    %vm104 = vcmask 261120
    %v106 = vsel %vm104, %v91, 0
    %v109 = vsel %vm104, %v92, 0
    %111 = vmatprep.subr.mxu0 0.0
    %112 = vmatpush1.msra.mxu0 %v93
    %113 = vmatprep.subr.mxu0 0.0
    %114 = vmatpush1.msra.mxu0 %v94
    %115 = vmatprep.subr.mxu0 0.0
    %116 = vmatpush1.msra.mxu0 %v95
    %117 = vmatprep.subr.mxu0 0.0
    %118 = vmatpush1.msra.mxu0 %v96
    %119 = vmatprep.subr.mxu0 0.0
    %120 = vmatpush1.msra.mxu0 0.0
    %121 = vmatprep.subr.mxu0 0.0
    %122 = vmatpush1.msra.mxu0 0.0
    %123 = vmatprep.subr.mxu0 0.0
    %124 = vmatpush1.msra.mxu0 0.0
    %125 = vmatprep.subr.mxu0 0.0
    %126 = vmatpush1.msra.mxu0 0.0
    %127 = vmatprep.subr.mxu0 0.0
    %128 = vmatpush1.msra.mxu0 0.0
    %129 = vmatprep.subr.mxu0 0.0
    %130 = vmatpush1.msra.mxu0 0.0
    %131 = vmatprep.subr.mxu0 0.0
    %132 = vmatpush1.msra.mxu0 0.0
    %133 = vmatprep.subr.mxu0 0.0
    %134 = vmatpush1.msra.mxu0 0.0
    %135 = vmatprep.subr.mxu0 0.0
    %136 = vmatpush1.msra.mxu0 0.0
    %137 = vmatprep.subr.mxu0 0.0
    %138 = vmatpush1.msra.mxu0 0.0
    %139 = vmatprep.subr.mxu0 0.0
    %140 = vmatpush1.msra.mxu0 0.0
    %141 = vmatprep.subr.mxu0 0.0
    %142 = vmatpush1.msra.mxu0 0.0
    %143 = vmatprep.subr.mxu0 0.0
    %144 = vmatpush1.msra.mxu0 0.0
    %145 = vmatprep.subr.mxu0 0.0
    %146 = vmatpush1.msra.mxu0 0.0
    %147 = vmatprep.subr.mxu0 0.0
    %148 = vmatpush1.msra.mxu0 0.0
    %149 = vmatprep.subr.mxu0 0.0
    %150 = vmatpush1.msra.mxu0 0.0
    %151 = vmatprep.subr.mxu0 0.0
    %152 = vmatpush1.msra.mxu0 0.0
    %153 = vmatprep.subr.mxu0 0.0
    %154 = vmatpush1.msra.mxu0 0.0
    %155 = vmatprep.subr.mxu0 0.0
    %156 = vmatpush1.msra.mxu0 0.0
    %157 = vmatprep.subr.mxu0 0.0
    %158 = vmatpush1.msra.mxu0 0.0
    %159 = vmatprep.subr.mxu0 0.0
    %160 = vmatpush1.msra.mxu0 0.0
    %161 = vmatprep.subr.mxu0 0.0
    %162 = vmatpush1.msra.mxu0 0.0
    %163 = vmatprep.subr.mxu0 0.0
    %164 = vmatpush1.msra.mxu0 0.0
    %165 = vmatprep.subr.mxu0 0.0
    %166 = vmatpush1.msra.mxu0 0.0
    %167 = vmatprep.subr.mxu0 0.0
    %168 = vmatpush1.msra.mxu0 0.0
    %169 = vmatprep.subr.mxu0 0.0
    %170 = vmatpush1.msra.mxu0 0.0
    %171 = vmatprep.subr.mxu0 0.0
    %172 = vmatpush1.msra.mxu0 0.0
    %173 = vmatprep.subr.mxu0 0.0
    %174 = vmatpush1.msra.mxu0 0.0
    %175 = vmatprep.mubr.f32.mxu0 0.0
    %176 = vmatmul.mubr.f32.gmra.mrb[0].mxu0 %v106
    %v177 = vpop.f32.mrb[0].mxu0
    %v178 = vadd.f32 %v102, %v177
    %v179 = vpop.f32.mrb[0].mxu0
    %180 = vmatprep.mubr.f32.mxu0 0.0
    %181 = vmatmul.mubr.f32.gmra.mrb[0].mxu0 %v109
    %v182 = vpop.f32.mrb[0].mxu0
    %v183 = vadd.f32 %v102, %v182
    %v184 = vpop.f32.mrb[0].mxu0
    %185 = vdwg.mxu0
    %v186 = vld [vmem:[#allocation8] sm:$0xff]
    %v187 = vld [vmem:[#allocation8 + $0x8] sm:$0xff]
    %v188 = vld [vmem:[#allocation8 + $0x10] sm:$0xff]
    %v189 = vld [vmem:[#allocation8 + $0x18] sm:$0xff]
    %v190 = vld [vmem:[%s8] sm:$0x1]
    %v192 = vlaneseq
    %v193 = vshrl.u32 %v192, 7
    %v194 = vsub.s32 0, %v193
    %v195 = vrot.slane %v190, %v194
    %197 = vmatprep.subr.mxu0 0.0
    %198 = vmatpush1.msra.mxu0 %v186
    %199 = vmatprep.subr.mxu0 0.0
    %200 = vmatpush1.msra.mxu0 %v187
    %201 = vmatprep.subr.mxu0 0.0
    %202 = vmatpush1.msra.mxu0 %v188
    %203 = vmatprep.subr.mxu0 0.0
    %204 = vmatpush1.msra.mxu0 %v189
    %205 = vmatprep.subr.mxu0 0.0
    %206 = vmatpush1.msra.mxu0 0.0
    %207 = vmatprep.subr.mxu0 0.0
    %208 = vmatpush1.msra.mxu0 0.0
    %209 = vmatprep.subr.mxu0 0.0
    %210 = vmatpush1.msra.mxu0 0.0
    %211 = vmatprep.subr.mxu0 0.0
    %212 = vmatpush1.msra.mxu0 0.0
    %213 = vmatprep.subr.mxu0 0.0
    %214 = vmatpush1.msra.mxu0 0.0
    %215 = vmatprep.subr.mxu0 0.0
    %216 = vmatpush1.msra.mxu0 0.0
    %217 = vmatprep.subr.mxu0 0.0
    %218 = vmatpush1.msra.mxu0 0.0
    %219 = vmatprep.subr.mxu0 0.0
    %220 = vmatpush1.msra.mxu0 0.0
    %221 = vmatprep.subr.mxu0 0.0
    %222 = vmatpush1.msra.mxu0 0.0
    %223 = vmatprep.subr.mxu0 0.0
    %224 = vmatpush1.msra.mxu0 0.0
    %225 = vmatprep.subr.mxu0 0.0
    %226 = vmatpush1.msra.mxu0 0.0
    %227 = vmatprep.subr.mxu0 0.0
    %228 = vmatpush1.msra.mxu0 0.0
    %229 = vmatprep.subr.mxu0 0.0
    %230 = vmatpush1.msra.mxu0 0.0
    %231 = vmatprep.subr.mxu0 0.0
    %232 = vmatpush1.msra.mxu0 0.0
    %233 = vmatprep.subr.mxu0 0.0
    %234 = vmatpush1.msra.mxu0 0.0
    %235 = vmatprep.subr.mxu0 0.0
    %236 = vmatpush1.msra.mxu0 0.0
    %237 = vmatprep.subr.mxu0 0.0
    %238 = vmatpush1.msra.mxu0 0.0
    %239 = vmatprep.subr.mxu0 0.0
    %240 = vmatpush1.msra.mxu0 0.0
    %241 = vmatprep.subr.mxu0 0.0
    %242 = vmatpush1.msra.mxu0 0.0
    %243 = vmatprep.subr.mxu0 0.0
    %244 = vmatpush1.msra.mxu0 0.0
    %245 = vmatprep.subr.mxu0 0.0
    %246 = vmatpush1.msra.mxu0 0.0
    %247 = vmatprep.subr.mxu0 0.0
    %248 = vmatpush1.msra.mxu0 0.0
    %249 = vmatprep.subr.mxu0 0.0
    %250 = vmatpush1.msra.mxu0 0.0
    %251 = vmatprep.subr.mxu0 0.0
    %252 = vmatpush1.msra.mxu0 0.0
    %253 = vmatprep.subr.mxu0 0.0
    %254 = vmatpush1.msra.mxu0 0.0
    %255 = vmatprep.subr.mxu0 0.0
    %256 = vmatpush1.msra.mxu0 0.0
    %257 = vmatprep.subr.mxu0 0.0
    %258 = vmatpush1.msra.mxu0 0.0
    %259 = vmatprep.subr.mxu0 0.0
    %260 = vmatpush1.msra.mxu0 0.0
    %261 = vmatprep.mubr.f32.mxu0 0.0
    %262 = vmatmul.mubr.f32.gmra.mrb[0].mxu0 %v106
    %v263 = vpop.f32.mrb[0].mxu0
    %v264 = vadd.f32 %v195, %v263
    %v265 = vpop.f32.mrb[0].mxu0
    %266 = vmatprep.mubr.f32.mxu0 0.0
    %267 = vmatmul.mubr.f32.gmra.mrb[0].mxu0 %v109
    %v268 = vpop.f32.mrb[0].mxu0
    %v269 = vadd.f32 %v195, %v268
    %v270 = vpop.f32.mrb[0].mxu0
    %271 = vdwg.mxu0
    %v272 = vld [vmem:[%s2] sm:$0x3]
    %v273 = vld [vmem:[#allocation7] sm:$0xff]
    %v274 = vld [vmem:[#allocation7 + $0x8] sm:$0xff]
    %v275 = vld [vmem:[#allocation7 + $0x10] sm:$0xff]
    %v276 = vld [vmem:[#allocation7 + $0x18] sm:$0xff]
    %v277 = vld [vmem:[%s6] sm:$0x1]
    %v279 = vlaneseq
    %v280 = vshrl.u32 %v279, 7
    %v281 = vsub.s32 0, %v280
    %v282 = vrot.slane %v277, %v281
    %v285 = vsel %vm104, %v272, 0
    %287 = vmatprep.subr.mxu0 0.0
    %288 = vmatpush1.msra.mxu0 %v273
    %289 = vmatprep.subr.mxu0 0.0
    %290 = vmatpush1.msra.mxu0 %v274
    %291 = vmatprep.subr.mxu0 0.0
    %292 = vmatpush1.msra.mxu0 %v275
    %293 = vmatprep.subr.mxu0 0.0
    %294 = vmatpush1.msra.mxu0 %v276
    %295 = vmatprep.subr.mxu0 0.0
    %296 = vmatpush1.msra.mxu0 0.0
    %297 = vmatprep.subr.mxu0 0.0
    %298 = vmatpush1.msra.mxu0 0.0
    %299 = vmatprep.subr.mxu0 0.0
    %300 = vmatpush1.msra.mxu0 0.0
    %301 = vmatprep.subr.mxu0 0.0
    %302 = vmatpush1.msra.mxu0 0.0
    %303 = vmatprep.subr.mxu0 0.0
    %304 = vmatpush1.msra.mxu0 0.0
    %305 = vmatprep.subr.mxu0 0.0
    %306 = vmatpush1.msra.mxu0 0.0
    %307 = vmatprep.subr.mxu0 0.0
    %308 = vmatpush1.msra.mxu0 0.0
    %309 = vmatprep.subr.mxu0 0.0
    %310 = vmatpush1.msra.mxu0 0.0
    %311 = vmatprep.subr.mxu0 0.0
    %312 = vmatpush1.msra.mxu0 0.0
    %313 = vmatprep.subr.mxu0 0.0
    %314 = vmatpush1.msra.mxu0 0.0
    %315 = vmatprep.subr.mxu0 0.0
    %316 = vmatpush1.msra.mxu0 0.0
    %317 = vmatprep.subr.mxu0 0.0
    %318 = vmatpush1.msra.mxu0 0.0
    %319 = vmatprep.subr.mxu0 0.0
    %320 = vmatpush1.msra.mxu0 0.0
    %321 = vmatprep.subr.mxu0 0.0
    %322 = vmatpush1.msra.mxu0 0.0
    %323 = vmatprep.subr.mxu0 0.0
    %324 = vmatpush1.msra.mxu0 0.0
    %325 = vmatprep.subr.mxu0 0.0
    %326 = vmatpush1.msra.mxu0 0.0
    %327 = vmatprep.subr.mxu0 0.0
    %328 = vmatpush1.msra.mxu0 0.0
    %329 = vmatprep.subr.mxu0 0.0
    %330 = vmatpush1.msra.mxu0 0.0
    %331 = vmatprep.subr.mxu0 0.0
    %332 = vmatpush1.msra.mxu0 0.0
    %333 = vmatprep.subr.mxu0 0.0
    %334 = vmatpush1.msra.mxu0 0.0
    %335 = vmatprep.subr.mxu0 0.0
    %336 = vmatpush1.msra.mxu0 0.0
    %337 = vmatprep.subr.mxu0 0.0
    %338 = vmatpush1.msra.mxu0 0.0
    %339 = vmatprep.subr.mxu0 0.0
    %340 = vmatpush1.msra.mxu0 0.0
    %341 = vmatprep.subr.mxu0 0.0
    %342 = vmatpush1.msra.mxu0 0.0
    %343 = vmatprep.subr.mxu0 0.0
    %344 = vmatpush1.msra.mxu0 0.0
    %345 = vmatprep.subr.mxu0 0.0
    %346 = vmatpush1.msra.mxu0 0.0
    %347 = vmatprep.subr.mxu0 0.0
    %348 = vmatpush1.msra.mxu0 0.0
    %349 = vmatprep.subr.mxu0 0.0
    %350 = vmatpush1.msra.mxu0 0.0
    %351 = vmatprep.mubr.f32.mxu0 0.0
    %352 = vmatmul.mubr.f32.gmra.mrb[0].mxu0 %v285
    %v353 = vpop.f32.mrb[0].mxu0
    %v354 = vadd.f32 %v282, %v353
    %v355 = vpop.f32.mrb[0].mxu0
    %356 = vdwg.mxu0
    %v357 = vmul.f32 %v354, 0.17677669
    %v360 = vunpack.c.l.s4 1966171168
    %v361 = vunpack.c.0.s8 %v360
    %v362 = vlaneseq
    %v363 = vshrl.u32 %v362, 7
    %v364 = vsub.s32 %v361, %v363
    %v365 = vrot.slane %v357, %v364
    %v366 = vcombine.high %v365, %v365
    %v368 = vunpack.c.l.s4 1966171168
    %v369 = vunpack.c.0.s8 %v368
    %v370 = vlaneseq
    %v371 = vshrl.u32 %v370, 7
    %v372 = vsub.s32 %v369, %v371
    %v373 = vrot.slane %v365, %v372
    %v375 = vunpack.c.l.s4 1966171168
    %v376 = vunpack.c.0.s8 %v375
    %v377 = vlaneseq
    %v378 = vshrl.u32 %v377, 7
    %v379 = vsub.s32 %v376, %v378
    %v380 = vrot.slane %v366, %v379
    %v381 = vlaneseq
    %v382 = vshrl.u32 %v381, 7
    %v383 = vsub.s32 0, %v382
    %v384 = vrot.slane %v373, %v383
    %v385 = vlaneseq
    %v386 = vshrl.u32 %v385, 7
    %v387 = vsub.s32 0, %v386
    %v388 = vrot.slane %v380, %v387
    %v391 = vmul.f32 %v178, %v384
    %v392 = vmul.f32 %v183, %v388
    %v393 = vsel %vm104, %v391, 0.0
    %394 = vadd.xlane.f32.xlu0 %v393
    %v395 = vpop.xlane.xlu0 %394
    %v396 = vsel %vm104, %v392, 0.0
    %397 = vadd.xlane.f32.xlu0 %v396
    %v398 = vpop.xlane.xlu0 %397
    %v399 = vlaneseq
    %v400 = vand.u32 %v399, 127
    %v401 = vld [vmem:[%s1] sm:$0x3]
    %402 = vset.pattern.permute.xlu0 0
    %403 = vperm.xlu0 %402, %v401
    %v404 = vpop.permute.xlu0 %403
    %vm405 = vcmp.lt.s32.totalorder %v400, %v404
    %v408 = vlaneseq
    %v409 = vshrl.u32 %v408, 7
    %v410 = vsub.s32 %v400, %v409
    %v411 = vrot.slane %v395, %v410
    %v412 = vlaneseq
    %v413 = vshrl.u32 %v412, 7
    %v414 = vsub.s32 %v400, %v413
    %v415 = vrot.slane %v398, %v414
    %vm416 = vcmask 1041409
    %v417 = vsel %vm416, %v415, %v411
    %v419 = vsel %vm405, %v417, -inf
    %vm420 = vcmask 58368
    %v421 = vsel %vm420, %v419, -inf
    %422 = vmax.xlane.f32.xlu0 %v421
    %v423 = vpop.xlane.xlu0 %422
    %v424 = vsub.f32 %v419, %v423
    %v425 = vmul.f32 %v424, 1.442695
    %v426 = vpow.pop %v425
    %v427 = vsel %vm420, %v426, 0.0
    %428 = vadd.xlane.f32.xlu0 %v427
    %v429 = vpop.xlane.xlu0 %428
    %v430 = vrcp.pop %v429
    %v431 = vmul.f32 %v426, %v430
    %v432 = vlaneseq
    %v433 = vshrl.u32 %v432, 7
    %v434 = vsub.s32 0, %v433
    %v435 = vrot.slane %v431, %v434
    %437 = vbcast.lane.b32.xlu0 %v435, 256
    %v438 = vpop.permute.xlu0 %437
    %v439 = vlaneseq
    %v440 = vshrl.u32 %v439, 7
    %v441 = vsub.s32 1, %v440
    %v442 = vrot.slane %v431, %v441
    %444 = vbcast.lane.b32.xlu0 %v442, 256
    %v445 = vpop.permute.xlu0 %444
    %v446 = vmul.f32 %v438, %v264
    %v447 = vmul.f32 %v445, %v269
    %v448 = vsel %vm104, %v446, 0.0
    %v449 = vrot.slane %v448, 4
    %v450 = vadd.f32 %v448, %v449
    %v451 = vrot.slane %v450, 2
    %v452 = vadd.f32 %v450, %v451
    %v453 = vrot.slane %v452, 1
    %v454 = vadd.f32 %v452, %v453
    %v455 = vsel %vm104, %v447, 0.0
    %v456 = vrot.slane %v455, 4
    %v457 = vadd.f32 %v455, %v456
    %v458 = vrot.slane %v457, 2
    %v459 = vadd.f32 %v457, %v458
    %v460 = vrot.slane %v459, 1
    %v461 = vadd.f32 %v459, %v460
    %v464 = vsel %vm416, %v461, %v454
    %vm466 = vcmask 254976
    %467 = vst.msk [vmem:[#allocation10] sm:$0x3] %vm466, %v464
    %468 = vst.msk [vmem:[#allocation11] sm:$0x3] %vm420, %v431
    // Predicated region
    $region54: #{tpu_custom_call.1} parent=1 // pred_check
      _
    $region55: #{tpu_custom_call.1} parent=1 // pred_check_branch
      %470 = sbr.rel (0) target = $region57
    $region56: #{tpu_custom_call.1} parent=1 // pred_region
      %s472 = ssub.s32 32, 32
      %473 = vsyncadd [#allocation4], %s472
      %s475 = sshll.u32 [#allocation10], 4
      %s476 = int_to_ptr.vmem [resolvable:$true] %s475
      %478 = dma.vmem_to_hbm [thread:$0]  %s476, 32, %s9, [#allocation4]
    $region57: #{tpu_custom_call.1} parent=1 // pred_fallthru
      _
    // Predicated region
    $region58: #{tpu_custom_call.1} parent=1 // pred_check
      _
    $region59: #{tpu_custom_call.1} parent=1 // pred_check_branch
      %480 = sbr.rel (0) target = $region61
    $region60: #{tpu_custom_call.1} parent=1 // pred_region
      %s482 = ssub.s32 32, 32
      %483 = vsyncadd [#allocation12], %s482
      %s485 = sshll.u32 [#allocation11], 4
      %s486 = int_to_ptr.vmem [resolvable:$true] %s485
      %488 = dma.vmem_to_hbm [thread:$0]  %s486, 32, %s10, [#allocation12]
    $region61: #{tpu_custom_call.1} parent=1 // pred_fallthru
      _
    // Predicated region
    $region62: #{tpu_custom_call.1} parent=1 // pred_check
      _
    $region63: #{tpu_custom_call.1} parent=1 // pred_check_branch
      %490 = sbr.rel (0) target = $region65
    $region64: #{tpu_custom_call.1} parent=1 // pred_region
      %491 = dma.done [#allocation4], 32
    $region65: #{tpu_custom_call.1} parent=1 // pred_fallthru
      _
    // Predicated region
    $region66: #{tpu_custom_call.1} parent=1 // pred_check
      _
    $region67: #{tpu_custom_call.1} parent=1 // pred_check_branch
      %493 = sbr.rel (0) target = $region69
    $region68: #{tpu_custom_call.1} parent=1 // pred_region
      %494 = dma.done [#allocation12], 32
    $region69: #{tpu_custom_call.1} parent=1 // pred_fallthru
      _
    %495 = vsyncpa [#allocation3], 1
    %496 = vsyncpa [#allocation6], 1
    %497 = vsyncpa [#allocation9], 1
    %498 = vsyncpa [#allocation4], 1
    %499 = vsyncpa [#allocation12], 1

</llo_original>
